<compile_context>
chip_gen: v7x
topology: tpu7x:2x2x1
jax: 0.10.0
libtpu: 0.0.40
codegen_flags: <defaults>
</compile_context>

<pallas_src>
import functools

import numpy as np
import jax
import jax.numpy as jnp
from jax import lax
from jax.experimental import pallas as pl
from jax.experimental.pallas import tpu as pltpu


def _round_up(x, m):
    return ((x + m - 1) // m) * m


def _activation(h, name):
    if name == "relu":
        return jnp.maximum(h, 0.0)
    if name == "gelu":
        return jax.nn.gelu(h)
    if name == "tanh":
        return jnp.tanh(h)
    raise ValueError(f"unsupported activation: {name}")


# -----------------------------------------------------------------------------
# Kernel: fused MLP decoder over one batch tile
# -----------------------------------------------------------------------------
def _mlp_decoder_kernel(x_ref, *refs, layer_meta, activ, eps, matmul_dtype):
    """
    x_ref        : (TB, D0)   batch tile of the input (f32)
    refs[:L]     : per-layer weights, layer l -> (D_l, D_{l+1}), bf16
    refs[L]      : packed vectors (rows, Dmax) f32 — bias/gamma/beta rows
    refs[L + 1]  : (TB, D_last) output tile
    layer_meta   : static tuple of (dout, has_norm, has_act, b_row, g_row, be_row)
    """
    n_layers = len(layer_meta)
    w_refs = refs[:n_layers]
    vecs_ref = refs[n_layers]
    out_ref = refs[n_layers + 1]

    h = x_ref[...]  # f32
    for li, (dout, has_norm, has_act, b_row, g_row, be_row) in enumerate(layer_meta):
        w = w_refs[li][...]                                   # bf16, no per-step cast
        b = vecs_ref[b_row:b_row + 1, :dout]                  # (1, dout) f32
        # bf16-fed MXU matmul, f32 accumulation.
        h = jnp.dot(h.astype(matmul_dtype), w,
                    preferred_element_type=jnp.float32) + b
        if has_norm:
            gamma = vecs_ref[g_row:g_row + 1, :dout]
            beta = vecs_ref[be_row:be_row + 1, :dout]
            mu = jnp.mean(h, axis=-1, keepdims=True)
            hc = h - mu                                       # reused (one subtract)
            var = jnp.mean(hc * hc, axis=-1, keepdims=True)
            h = hc * lax.rsqrt(var + eps)
            h = h * gamma + beta
        if has_act:
            h = _activation(h, activ)
        # dropout_p: inference forward -> identity (no-op)

    out_ref[...] = h.astype(out_ref.dtype)


# -----------------------------------------------------------------------------
# Wrapper: TextEmbedDecoder.forward
# -----------------------------------------------------------------------------
def text_embed_decoder_forward(params, x, *, batch_tile=512,
                               matmul_dtype=jnp.bfloat16,
                               out_dtype=jnp.float32):
    cfg = params["config"]
    dims = cfg["dims"]                 # [in_dim, d1, ..., d_out]
    layer_spec = cfg["layer_spec"]     # per-layer (has_norm, has_act)
    d0, d_out = dims[0], dims[-1]

    B, D = x.shape
    assert D == d0, f"expected last dim {d0}, got {D}"

    # ---- batch tiling: fat tiles, but never larger than the (8-rounded) batch
    bp8 = _round_up(B, 8)
    tb = min(_round_up(batch_tile, 8), bp8)
    n_tiles = pl.cdiv(bp8, tb)
    # Keep a few grid steps when the batch is big enough so the ("parallel",)
    # axis still load-balances across v7x's two TensorCores.
    while n_tiles < 4 and tb >= 512 and tb % 16 == 0:
        tb //= 2
        n_tiles = pl.cdiv(bp8, tb)
    Bp = n_tiles * tb
    if Bp != B:
        x = jnp.pad(x, ((0, Bp - B), (0, 0)))

    # ---- weights: bf16 in HBM (no per-step cast, half the weight DMA)
    weights = [jnp.asarray(layer["w"], dtype=matmul_dtype)
               for layer in params["layers"]]

    # ---- pack bias/gamma/beta into ONE small f32 array (one DMA descriptor)
    vec_rows, row_ids = [], []
    for layer, (has_norm, _) in zip(params["layers"], layer_spec):
        b_row = len(vec_rows)
        vec_rows.append(jnp.asarray(layer["b"], jnp.float32).reshape(-1))
        g_row = be_row = -1
        if has_norm:
            g_row = len(vec_rows)
            vec_rows.append(jnp.asarray(layer["gamma"], jnp.float32).reshape(-1))
            be_row = len(vec_rows)
            vec_rows.append(jnp.asarray(layer["beta"], jnp.float32).reshape(-1))
        row_ids.append((b_row, g_row, be_row))
    max_d = _round_up(max(dims[1:]), 128)
    n_rows = _round_up(len(vec_rows), 8)
    vecs = jnp.zeros((n_rows, max_d), jnp.float32)
    for r, v in enumerate(vec_rows):
        vecs = vecs.at[r, :v.shape[0]].set(v)

    layer_meta = tuple(
        (dims[i + 1], layer_spec[i][0], layer_spec[i][1], *row_ids[i])
        for i in range(len(layer_spec))
    )

    kernel = functools.partial(
        _mlp_decoder_kernel,
        layer_meta=layer_meta,
        activ=cfg["activ"],
        eps=cfg["eps"],
        matmul_dtype=matmul_dtype,
    )

    in_specs = [pl.BlockSpec((tb, d0), lambda i: (i, 0))]
    # Params are small and resident across every grid step (block = full array,
    # constant index_map).
    in_specs += [pl.BlockSpec(w.shape, lambda i: (0, 0)) for w in weights]
    in_specs += [pl.BlockSpec(vecs.shape, lambda i: (0, 0))]
    out_spec = pl.BlockSpec((tb, d_out), lambda i: (i, 0))

    out = pl.pallas_call(
        kernel,
        out_shape=jax.ShapeDtypeStruct((Bp, d_out), out_dtype),
        grid=(n_tiles,),
        in_specs=in_specs,
        out_specs=out_spec,
        compiler_params=pltpu.CompilerParams(
            dimension_semantics=("parallel",),
            vmem_limit_bytes=32 * 1024 * 1024,
        ),
    )(x, *weights, vecs)

    return out[:B]


# -----------------------------------------------------------------------------
# Deterministic parameter init matching the PyTorch module's arg dict
# -----------------------------------------------------------------------------
def init_params(key, args, *, matmul_dtype=jnp.bfloat16):
    in_dim = args["latent_dim"]
    layer_dims = list(args["layers"])
    n = len(layer_dims)
    dims = [in_dim] + layer_dims

    # Hidden blocks get norm + activation (+ dropout); the final layer is a
    # plain Linear projection (decoder head).
    # TODO(synk): norm_layer is assumed to be LayerNorm; BatchNorm running
    # stats (a per-feature affine at inference) is not implemented here.
    norm_on = args.get("norm_layer") is not None
    layer_spec = tuple(((norm_on and i < n - 1), i < n - 1) for i in range(n))

    layers = []
    for i in range(n):
        din, dout = dims[i], dims[i + 1]
        key, kw, kb, kg, kbe = jax.random.split(key, 5)
        layer = {
            # weights stored bf16 in HBM (matmul feed dtype); vectors stay f32
            "w": (jax.random.normal(kw, (din, dout), jnp.float32)
                  / np.sqrt(din)).astype(matmul_dtype),
            "b": 0.1 * jax.random.normal(kb, (1, dout), jnp.float32),
        }
        if layer_spec[i][0]:
            layer["gamma"] = 1.0 + 0.1 * jax.random.normal(kg, (1, dout), jnp.float32)
            layer["beta"] = 0.1 * jax.random.normal(kbe, (1, dout), jnp.float32)
        layers.append(layer)

    config = {
        "dims": dims,
        "layer_spec": layer_spec,
        "activ": args["activ"],
        "eps": 1e-5,
    }
    return {"layers": layers, "config": config}


# -----------------------------------------------------------------------------
# Pure-JAX reference (same numerics: bf16-fed matmul, f32 accumulate/elementwise)
# -----------------------------------------------------------------------------
def text_embed_decoder_ref(params, x, *, matmul_dtype=jnp.bfloat16):
    cfg = params["config"]
    h = x.astype(jnp.float32)
    for layer, (has_norm, has_act) in zip(params["layers"], cfg["layer_spec"]):
        h = jnp.dot(h.astype(matmul_dtype), layer["w"].astype(matmul_dtype),
                    preferred_element_type=jnp.float32) + layer["b"]
        if has_norm:
            mu = jnp.mean(h, axis=-1, keepdims=True)
            var = jnp.mean(jnp.square(h - mu), axis=-1, keepdims=True)
            h = (h - mu) * lax.rsqrt(var + cfg["eps"])
            h = h * layer["gamma"] + layer["beta"]
        if has_act:
            h = _activation(h, cfg["activ"])
    return h


# -----------------------------------------------------------------------------
if __name__ == "__main__":
    args = {
        "mlp": "standard",
        "latent_dim": 32,
        "layers": [64, 128],
        "activ": "relu",
        "norm_layer": "layer_norm",
        "dropout_p": 0.1,   # inference: dropout is identity
    }
    batch = 16

    key = jax.random.PRNGKey(0)
    kp, kx = jax.random.split(key)
    params = init_params(kp, args)
    x = jax.random.normal(kx, (batch, args["latent_dim"]), jnp.float32)

    out = text_embed_decoder_forward(params, x)
    out = jax.block_until_ready(out)
    assert out.shape == (batch, args["layers"][-1])

    ref = text_embed_decoder_ref(params, x)
    np.testing.assert_allclose(np.asarray(out), np.asarray(ref),
                               rtol=2e-2, atol=2e-2)

    print("KERNEL_OK")
</pallas_src>

<mosaic_0001>
module attributes {stable_mosaic.version = 11 : i64} {
  func.func @_mlp_decoder_kernel(%arg0: i32, %arg1: memref<16x32xf32, #tpu.memory_space<vmem>>, %arg2: memref<32x64xbf16, #tpu.memory_space<vmem>>, %arg3: memref<64x128xbf16, #tpu.memory_space<vmem>>, %arg4: memref<8x128xf32, #tpu.memory_space<vmem>>, %arg5: memref<16x128xf32, #tpu.memory_space<vmem>>) attributes {dimension_semantics = [#tpu.dimension_semantics<parallel>], iteration_bounds = array<i64: 1>, scalar_prefetch = 0 : i64, scratch_operands = 0 : i64, tpu.core_type = #tpu.core_type<tc>, window_params = [{transform_indices = @transform_0, window_bounds = array<i64: 16, 32>}, {pipeline_mode = #tpu.pipeline_mode<synchronous>, transform_indices = @transform_1, window_bounds = array<i64: 32, 64>}, {pipeline_mode = #tpu.pipeline_mode<synchronous>, transform_indices = @transform_2, window_bounds = array<i64: 64, 128>}, {pipeline_mode = #tpu.pipeline_mode<synchronous>, transform_indices = @transform_3, window_bounds = array<i64: 8, 128>}, {transform_indices = @transform_4, window_bounds = array<i64: 16, 128>}]} {
    %c0 = arith.constant 0 : index
    %c0_0 = arith.constant 0 : index
    %0 = vector.load %arg1[%c0, %c0_0] : memref<16x32xf32, #tpu.memory_space<vmem>>, vector<16x32xf32>
    %c0_1 = arith.constant 0 : index
    %c0_2 = arith.constant 0 : index
    %1 = vector.load %arg2[%c0_1, %c0_2] : memref<32x64xbf16, #tpu.memory_space<vmem>>, vector<32x64xbf16>
    %c0_3 = arith.constant 0 : index
    %c0_4 = arith.constant 0 : index
    %2 = vector.load %arg4[%c0_3, %c0_4] : memref<8x128xf32, #tpu.memory_space<vmem>>, vector<1x64xf32>
    %3 = arith.truncf %0 : vector<16x32xf32> to vector<16x32xbf16>
    %cst = arith.constant dense<0.000000e+00> : vector<16x64xf32>
    %4 = tpu.matmul %3, %1, %cst {dimension_numbers = #tpu.dot_dimension_numbers<[1], [0], [0], [1], [0, 0, 1, 1], [], []>} : vector<16x32xbf16>, vector<32x64xbf16>, vector<16x64xf32> -> vector<16x64xf32>
    %5 = vector.broadcast %2 : vector<1x64xf32> to vector<16x64xf32>
    %6 = arith.addf %4, %5 : vector<16x64xf32>
    %c1 = arith.constant 1 : index
    %c0_5 = arith.constant 0 : index
    %7 = vector.load %arg4[%c1, %c0_5] : memref<8x128xf32, #tpu.memory_space<vmem>>, vector<1x64xf32>
    %c2 = arith.constant 2 : index
    %c0_6 = arith.constant 0 : index
    %8 = vector.load %arg4[%c2, %c0_6] : memref<8x128xf32, #tpu.memory_space<vmem>>, vector<1x64xf32>
    %cst_7 = arith.constant dense<0.000000e+00> : vector<16xf32>
    %9 = vector.multi_reduction <add>, %6, %cst_7 [1] : vector<16x64xf32> to vector<16xf32>
    %10 = vector.shape_cast %9 : vector<16xf32> to vector<16x1xf32>
    %cst_8 = arith.constant 6.400000e+01 : f32
    %11 = vector.broadcast %cst_8 : f32 to vector<16x1xf32>
    %12 = arith.divf %10, %11 : vector<16x1xf32>
    %13 = vector.broadcast %12 : vector<16x1xf32> to vector<16x64xf32>
    %14 = arith.subf %6, %13 : vector<16x64xf32>
    %15 = arith.mulf %14, %14 : vector<16x64xf32>
    %cst_9 = arith.constant dense<0.000000e+00> : vector<16xf32>
    %16 = vector.multi_reduction <add>, %15, %cst_9 [1] : vector<16x64xf32> to vector<16xf32>
    %17 = vector.shape_cast %16 : vector<16xf32> to vector<16x1xf32>
    %cst_10 = arith.constant 6.400000e+01 : f32
    %18 = vector.broadcast %cst_10 : f32 to vector<16x1xf32>
    %19 = arith.divf %17, %18 : vector<16x1xf32>
    %cst_11 = arith.constant 9.99999974E-6 : f32
    %20 = vector.broadcast %cst_11 : f32 to vector<16x1xf32>
    %21 = arith.addf %19, %20 : vector<16x1xf32>
    %22 = math.rsqrt %21 : vector<16x1xf32>
    %23 = vector.broadcast %22 : vector<16x1xf32> to vector<16x64xf32>
    %24 = arith.mulf %14, %23 : vector<16x64xf32>
    %25 = vector.broadcast %7 : vector<1x64xf32> to vector<16x64xf32>
    %26 = arith.mulf %24, %25 : vector<16x64xf32>
    %27 = vector.broadcast %8 : vector<1x64xf32> to vector<16x64xf32>
    %28 = arith.addf %26, %27 : vector<16x64xf32>
    %cst_12 = arith.constant 0.000000e+00 : f32
    %29 = vector.broadcast %cst_12 : f32 to vector<16x64xf32>
    %30 = arith.maximumf %28, %29 : vector<16x64xf32>
    %c0_13 = arith.constant 0 : index
    %c0_14 = arith.constant 0 : index
    %31 = vector.load %arg3[%c0_13, %c0_14] : memref<64x128xbf16, #tpu.memory_space<vmem>>, vector<64x128xbf16>
    %c3 = arith.constant 3 : index
    %c0_15 = arith.constant 0 : index
    %32 = vector.load %arg4[%c3, %c0_15] : memref<8x128xf32, #tpu.memory_space<vmem>>, vector<1x128xf32>
    %33 = arith.truncf %30 : vector<16x64xf32> to vector<16x64xbf16>
    %cst_16 = arith.constant dense<0.000000e+00> : vector<16x128xf32>
    %34 = tpu.matmul %33, %31, %cst_16 {dimension_numbers = #tpu.dot_dimension_numbers<[1], [0], [0], [1], [0, 0, 1, 1], [], []>} : vector<16x64xbf16>, vector<64x128xbf16>, vector<16x128xf32> -> vector<16x128xf32>
    %35 = vector.broadcast %32 : vector<1x128xf32> to vector<16x128xf32>
    %36 = arith.addf %34, %35 : vector<16x128xf32>
    %c0_17 = arith.constant 0 : index
    %c0_18 = arith.constant 0 : index
    %37 = vector.load %arg5[%c0_17, %c0_18] : memref<16x128xf32, #tpu.memory_space<vmem>>, vector<16x128xf32>
    tpu.vector_store %arg5[%c0_17, %c0_18], %36 {strides = array<i32>} : memref<16x128xf32, #tpu.memory_space<vmem>>, vector<16x128xf32>,
    return
  }
  func.func @transform_0(%arg0: i32) -> (i32, i32) {
    %c0_i32 = arith.constant 0 : i32
    %c0_i32_0 = arith.constant 0 : i32
    return %arg0, %c0_i32 : i32, i32
  }
  func.func @transform_1(%arg0: i32) -> (i32, i32) {
    %c0_i32 = arith.constant 0 : i32
    %c0_i32_0 = arith.constant 0 : i32
    %c0_i32_1 = arith.constant 0 : i32
    return %c0_i32, %c0_i32_0 : i32, i32
  }
  func.func @transform_2(%arg0: i32) -> (i32, i32) {
    %c0_i32 = arith.constant 0 : i32
    %c0_i32_0 = arith.constant 0 : i32
    %c0_i32_1 = arith.constant 0 : i32
    return %c0_i32, %c0_i32_0 : i32, i32
  }
  func.func @transform_3(%arg0: i32) -> (i32, i32) {
    %c0_i32 = arith.constant 0 : i32
    %c0_i32_0 = arith.constant 0 : i32
    %c0_i32_1 = arith.constant 0 : i32
    return %c0_i32, %c0_i32_0 : i32, i32
  }
  func.func @transform_4(%arg0: i32) -> (i32, i32) {
    %c0_i32 = arith.constant 0 : i32
    %c0_i32_0 = arith.constant 0 : i32
    return %arg0, %c0_i32 : i32, i32
  }
}

</mosaic_0001>

<llo_original>
// kernel: tpu_custom_call.1
$region0: #{tpu_custom_call.1}
  #allocation0 [shape = 'u32[]', space=smem, size = 0x4, offset = 0x4, fixed_abs, tag = 'smem constant byte address 0x4 - core index']
  #allocation1 [shape = 'u32[144,128]{1,0:T(1,128)}', space=vmem, size = 0x12000, scoped, tag = 'internal scratch']
  %s0 = inlined_call_operand.hbm [shape: f32[16,32], index: 0, kind: input, shape index: {}]
  %s1 = inlined_call_operand.hbm [shape: bf16[32,64], index: 1, kind: input, shape index: {}]
  %s2 = inlined_call_operand.hbm [shape: bf16[64,128], index: 2, kind: input, shape index: {}]
  %s3 = inlined_call_operand.vmem [shape: f32[8,128], index: 3, kind: input, shape index: {}]
  %s4 = inlined_call_operand.hbm [shape: f32[16,128], index: 4, kind: output, shape index: {}]
  %s5 = sld [smem:[#allocation0]]
  $region38: #{tpu_custom_call.1} parent=0
    _
  %s7 = ssub.s32 1, %s5
  %s8 = scalar_select 0, %s7, %s5
  $region1: #{tpu_custom_call.1} parent=0
    #allocation2 [shape = 'u8[8192]{0}', space=vmem, size = 0x2000, scoped, tag = 'input window, operand 0, single buffered']
    #allocation3 [shape = 's32[1]{0}', space=sflag, size = 0x4, scoped, tag = 'scoped memory for tpu_custom_call.1']
    #allocation4 [shape = 's32[1]{0}', space=sflag, size = 0x4, scoped, tag = 'scoped memory for tpu_custom_call.1']
    #allocation5 [shape = 'u8[8192]{0}', space=vmem, size = 0x2000, scoped, tag = 'input window, operand 1, single buffered']
    #allocation6 [shape = 's32[1]{0}', space=sflag, size = 0x4, scoped, tag = 'scoped memory for tpu_custom_call.1']
    #allocation7 [shape = 'u8[16384]{0}', space=vmem, size = 0x4000, scoped, tag = 'input window, operand 2, single buffered']
    #allocation8 [shape = 'u8[8192]{0}', space=vmem, size = 0x2000, scoped, tag = 'output window, operand 0, single buffered']
    %9 = vsyncpa [#allocation3], 0
    %10 = vsyncpa [#allocation6], 0
    %11 = vsyncpa [#allocation4], 0
    // Predicated region
    $region2: #{tpu_custom_call.1} parent=1 // pred_check
      _
    $region3: #{tpu_custom_call.1} parent=1 // pred_check_branch
      %13 = sbr.rel (0) target = $region5
    $region4: #{tpu_custom_call.1} parent=1 // pred_region
      %s15 = ssub.s32 256, 256
      %16 = vsyncadd [#allocation3], %s15
      %s17 = sshll.u32 [#allocation2], 4
      %s18 = int_to_ptr.vmem [resolvable:$true] %s17
      %23 = dma.hbm_to_vmem [thread:$0]  %s0, 256, %s18, [#allocation3], 128, 128, 8
    $region5: #{tpu_custom_call.1} parent=1 // pred_fallthru
      _
    // Predicated region
    $region6: #{tpu_custom_call.1} parent=1 // pred_check
      _
    $region7: #{tpu_custom_call.1} parent=1 // pred_check_branch
      %25 = sbr.rel (0) target = $region9
    $region8: #{tpu_custom_call.1} parent=1 // pred_region
      %s27 = ssub.s32 256, 256
      %28 = vsyncadd [#allocation6], %s27
      %s29 = sshll.u32 [#allocation5], 4
      %s30 = int_to_ptr.vmem [resolvable:$true] %s29
      %35 = dma.hbm_to_vmem [thread:$0]  %s1, 256, %s30, [#allocation6], 64, 64, 4
    $region9: #{tpu_custom_call.1} parent=1 // pred_fallthru
      _
    // Predicated region
    $region10: #{tpu_custom_call.1} parent=1 // pred_check
      _
    $region11: #{tpu_custom_call.1} parent=1 // pred_check_branch
      %37 = sbr.rel (0) target = $region13
    $region12: #{tpu_custom_call.1} parent=1 // pred_region
      %s39 = ssub.s32 512, 512
      %40 = vsyncadd [#allocation6], %s39
      %s41 = sshll.u32 [#allocation7], 4
      %s42 = int_to_ptr.vmem [resolvable:$true] %s41
      %47 = dma.hbm_to_vmem [thread:$0]  %s2, 512, %s42, [#allocation6], 64, 64, 4
    $region13: #{tpu_custom_call.1} parent=1 // pred_fallthru
      _
    // Predicated region
    $region14: #{tpu_custom_call.1} parent=1 // pred_check
      _
    $region15: #{tpu_custom_call.1} parent=1 // pred_check_branch
      %49 = sbr.rel (0) target = $region17
    $region16: #{tpu_custom_call.1} parent=1 // pred_region
      _
    $region17: #{tpu_custom_call.1} parent=1 // pred_fallthru
      _
    // Predicated region
    $region18: #{tpu_custom_call.1} parent=1 // pred_check
      _
    $region19: #{tpu_custom_call.1} parent=1 // pred_check_branch
      %51 = sbr.rel (0) target = $region21
    $region20: #{tpu_custom_call.1} parent=1 // pred_region
      %52 = dma.done [#allocation3], 256
    $region21: #{tpu_custom_call.1} parent=1 // pred_fallthru
      _
    // Predicated region
    $region22: #{tpu_custom_call.1} parent=1 // pred_check
      _
    $region23: #{tpu_custom_call.1} parent=1 // pred_check_branch
      %54 = sbr.rel (0) target = $region25
    $region24: #{tpu_custom_call.1} parent=1 // pred_region
      %55 = dma.done [#allocation6], 256
    $region25: #{tpu_custom_call.1} parent=1 // pred_fallthru
      _
    // Predicated region
    $region26: #{tpu_custom_call.1} parent=1 // pred_check
      _
    $region27: #{tpu_custom_call.1} parent=1 // pred_check_branch
      %57 = sbr.rel (0) target = $region29
    $region28: #{tpu_custom_call.1} parent=1 // pred_region
      %58 = dma.done [#allocation6], 512
    $region29: #{tpu_custom_call.1} parent=1 // pred_fallthru
      _
    %v60 = vld [vmem:[#allocation2] sm:$0xff]
    %v61 = vld [vmem:[#allocation2 + $0x8] sm:$0xff]
    %v62 = vld [vmem:[#allocation5] sm:$0xf]
    %v63 = vld [vmem:[#allocation5 + $0x4] sm:$0xf]
    %v64 = vld [vmem:[#allocation5 + $0x8] sm:$0xf]
    %v65 = vld [vmem:[#allocation5 + $0xc] sm:$0xf]
    %v66 = vld [vmem:[%s3] sm:$0x1]
    %v67 = vpack.c.bf16 %v61, %v60
    %v68 = vlaneseq
    %v69 = vshrl.u32 %v68, 7
    %v70 = vsub.s32 0, %v69
    %v71 = vrot.slane %v66, %v70
    %v76 = vunpack.c.l.b16 %v62
    %v77 = vunpack.c.l.b16 %v63
    %v78 = vunpack.c.l.b16 %v64
    %v79 = vunpack.c.l.b16 %v65
    %v80 = vpack.c.b16 %v77, %v76
    %v81 = vpack.c.b16 %v79, %v78
    %vm84 = vcmask 261120
    %v86 = vsel %vm84, %v67, 0
    %88 = vmatprep.subr.bf16.mxu0 0
    %89 = vmatpush1.bf16.msra.mxu0 %v80
    %90 = vmatprep.subr.bf16.mxu0 0
    %91 = vmatpush1.bf16.msra.mxu0 %v81
    %92 = vmatprep.subr.bf16.mxu0 0
    %93 = vmatpush1.bf16.msra.mxu0 0
    %94 = vmatprep.subr.bf16.mxu0 0
    %95 = vmatpush1.bf16.msra.mxu0 0
    %96 = vmatprep.subr.bf16.mxu0 0
    %97 = vmatpush1.bf16.msra.mxu0 0
    %98 = vmatprep.subr.bf16.mxu0 0
    %99 = vmatpush1.bf16.msra.mxu0 0
    %100 = vmatprep.subr.bf16.mxu0 0
    %101 = vmatpush1.bf16.msra.mxu0 0
    %102 = vmatprep.subr.bf16.mxu0 0
    %103 = vmatpush1.bf16.msra.mxu0 0
    %104 = vmatprep.subr.bf16.mxu0 0
    %105 = vmatpush1.bf16.msra.mxu0 0
    %106 = vmatprep.subr.bf16.mxu0 0
    %107 = vmatpush1.bf16.msra.mxu0 0
    %108 = vmatprep.subr.bf16.mxu0 0
    %109 = vmatpush1.bf16.msra.mxu0 0
    %110 = vmatprep.subr.bf16.mxu0 0
    %111 = vmatpush1.bf16.msra.mxu0 0
    %112 = vmatprep.subr.bf16.mxu0 0
    %113 = vmatpush1.bf16.msra.mxu0 0
    %114 = vmatprep.subr.bf16.mxu0 0
    %115 = vmatpush1.bf16.msra.mxu0 0
    %116 = vmatprep.subr.bf16.mxu0 0
    %117 = vmatpush1.bf16.msra.mxu0 0
    %118 = vmatprep.subr.bf16.mxu0 0
    %119 = vmatpush1.bf16.msra.mxu0 0
    %120 = vmatprep.mubr.bf16.mxu0 0
    %121 = vmatmul.mubr.bf16.gmra.mrb[0].mxu0 %v86
    %v122 = vpop.f32.mrb[0].mxu0
    %v123 = vadd.f32 %v71, %v122
    %v124 = vpop.f32.mrb[0].mxu0
    %v125 = vpop.f32.mrb[0].mxu0
    %v126 = vadd.f32 %v71, %v125
    %v127 = vpop.f32.mrb[0].mxu0
    %128 = vdwg.mxu0
    %v129 = vld [vmem:[%s3 + $0x1] sm:$0x1]
    %v130 = vld [vmem:[%s3 + $0x2] sm:$0x1]
    %vm131 = vcmask 523264
    %v132 = vsel %vm131, %v123, 0.0
    %133 = vadd.xlane.f32.xlu0 %v132
    %v134 = vpop.xlane.xlu0 %133
    %v135 = vsel %vm131, %v126, 0.0
    %136 = vadd.xlane.f32.xlu0 %v135
    %v137 = vpop.xlane.xlu0 %136
    %v138 = vrcp.pop 64.0
    %v139 = vmul.f32 %v134, %v138
    %v140 = vmul.f32 %v137, %v138
    %v141 = vsub.f32 %v123, %v139
    %v142 = vsub.f32 %v126, %v140
    %v143 = vmul.f32 %v141, %v141
    %v144 = vmul.f32 %v142, %v142
    %v145 = vsel %vm131, %v143, 0.0
    %146 = vadd.xlane.f32.xlu0 %v145
    %v147 = vpop.xlane.xlu0 %146
    %v148 = vsel %vm131, %v144, 0.0
    %149 = vadd.xlane.f32.xlu0 %v148
    %v150 = vpop.xlane.xlu0 %149
    %v151 = vmul.f32 %v147, %v138
    %v152 = vmul.f32 %v150, %v138
    %v153 = vadd.f32 %v151, 1e-05
    %v154 = vadd.f32 %v152, 1e-05
    %v155 = vrsqrt.pop %v153
    %v156 = vrsqrt.pop %v154
    %v157 = vmul.f32 %v141, %v155
    %v158 = vmul.f32 %v142, %v156
    %v159 = vlaneseq
    %v160 = vshrl.u32 %v159, 7
    %v161 = vsub.s32 0, %v160
    %v162 = vrot.slane %v129, %v161
    %v163 = vmul.f32 %v157, %v162
    %v164 = vmul.f32 %v158, %v162
    %v165 = vlaneseq
    %v166 = vshrl.u32 %v165, 7
    %v167 = vsub.s32 0, %v166
    %v168 = vrot.slane %v130, %v167
    %v169 = vadd.f32 %v163, %v168
    %v170 = vadd.f32 %v164, %v168
    %v171 = vmax.f32 %v169, 0.0
    %v172 = vmax.f32 %v170, 0.0
    %v173 = vld [vmem:[#allocation7] sm:$0xf]
    %v174 = vld [vmem:[#allocation7 + $0x4] sm:$0xf]
    %v175 = vld [vmem:[#allocation7 + $0x8] sm:$0xf]
    %v176 = vld [vmem:[#allocation7 + $0xc] sm:$0xf]
    %v177 = vld [vmem:[#allocation7 + $0x10] sm:$0xf]
    %v178 = vld [vmem:[#allocation7 + $0x14] sm:$0xf]
    %v179 = vld [vmem:[#allocation7 + $0x18] sm:$0xf]
    %v180 = vld [vmem:[#allocation7 + $0x1c] sm:$0xf]
    %v181 = vld [vmem:[%s3 + $0x3] sm:$0x1]
    %v182 = vpack.c.bf16 %v172, %v171
    %v183 = vlaneseq
    %v184 = vshrl.u32 %v183, 7
    %v185 = vsub.s32 0, %v184
    %v186 = vrot.slane %v181, %v185
    %v195 = vunpack.c.l.b16 %v173
    %v196 = vunpack.c.l.b16 %v174
    %v197 = vunpack.c.l.b16 %v175
    %v198 = vunpack.c.l.b16 %v176
    %v199 = vunpack.c.l.b16 %v177
    %v200 = vunpack.c.l.b16 %v178
    %v201 = vunpack.c.l.b16 %v179
    %v202 = vunpack.c.l.b16 %v180
    %v203 = vpack.c.b16 %v196, %v195
    %v204 = vpack.c.b16 %v198, %v197
    %v205 = vpack.c.b16 %v200, %v199
    %v206 = vpack.c.b16 %v202, %v201
    %v212 = vsel %vm131, %v182, 0
    %214 = vmatprep.subr.bf16.mxu0 0
    %215 = vmatpush1.bf16.msra.mxu0 %v203
    %216 = vmatprep.subr.bf16.mxu0 0
    %217 = vmatpush1.bf16.msra.mxu0 %v204
    %218 = vmatprep.subr.bf16.mxu0 0
    %219 = vmatpush1.bf16.msra.mxu0 %v205
    %220 = vmatprep.subr.bf16.mxu0 0
    %221 = vmatpush1.bf16.msra.mxu0 %v206
    %222 = vmatprep.subr.bf16.mxu0 0
    %223 = vmatpush1.bf16.msra.mxu0 0
    %224 = vmatprep.subr.bf16.mxu0 0
    %225 = vmatpush1.bf16.msra.mxu0 0
    %226 = vmatprep.subr.bf16.mxu0 0
    %227 = vmatpush1.bf16.msra.mxu0 0
    %228 = vmatprep.subr.bf16.mxu0 0
    %229 = vmatpush1.bf16.msra.mxu0 0
    %230 = vmatprep.subr.bf16.mxu0 0
    %231 = vmatpush1.bf16.msra.mxu0 0
    %232 = vmatprep.subr.bf16.mxu0 0
    %233 = vmatpush1.bf16.msra.mxu0 0
    %234 = vmatprep.subr.bf16.mxu0 0
    %235 = vmatpush1.bf16.msra.mxu0 0
    %236 = vmatprep.subr.bf16.mxu0 0
    %237 = vmatpush1.bf16.msra.mxu0 0
    %238 = vmatprep.subr.bf16.mxu0 0
    %239 = vmatpush1.bf16.msra.mxu0 0
    %240 = vmatprep.subr.bf16.mxu0 0
    %241 = vmatpush1.bf16.msra.mxu0 0
    %242 = vmatprep.subr.bf16.mxu0 0
    %243 = vmatpush1.bf16.msra.mxu0 0
    %244 = vmatprep.subr.bf16.mxu0 0
    %245 = vmatpush1.bf16.msra.mxu0 0
    %246 = vmatprep.mubr.bf16.mxu0 0
    %247 = vmatmul.mubr.bf16.gmra.mrb[0].mxu0 %v212
    %v248 = vpop.f32.mrb[0].mxu0
    %v249 = vadd.f32 %v186, %v248
    %v250 = vpop.f32.mrb[0].mxu0
    %v251 = vpop.f32.mrb[0].mxu0
    %v252 = vadd.f32 %v186, %v251
    %v253 = vpop.f32.mrb[0].mxu0
    %254 = vdwg.mxu0
    %255 = vst [vmem:[#allocation8] sm:$0xff] %v249
    %256 = vst [vmem:[#allocation8 + $0x8] sm:$0xff] %v252
    // Predicated region
    $region30: #{tpu_custom_call.1} parent=1 // pred_check
      _
    $region31: #{tpu_custom_call.1} parent=1 // pred_check_branch
      %258 = sbr.rel (0) target = $region33
    $region32: #{tpu_custom_call.1} parent=1 // pred_region
      %s260 = ssub.s32 256, 256
      %261 = vsyncadd [#allocation4], %s260
      %s262 = sshll.u32 [#allocation8], 4
      %s263 = int_to_ptr.vmem [resolvable:$true] %s262
      %268 = dma.vmem_to_hbm [thread:$0]  %s263, 256, %s4, [#allocation4], 128, 128, 8
    $region33: #{tpu_custom_call.1} parent=1 // pred_fallthru
      _
    // Predicated region
    $region34: #{tpu_custom_call.1} parent=1 // pred_check
      _
    $region35: #{tpu_custom_call.1} parent=1 // pred_check_branch
      %270 = sbr.rel (0) target = $region37
    $region36: #{tpu_custom_call.1} parent=1 // pred_region
      %271 = dma.done [#allocation4], 256
    $region37: #{tpu_custom_call.1} parent=1 // pred_fallthru
      _
    %272 = vsyncpa [#allocation3], 1
    %273 = vsyncpa [#allocation6], 1
    %274 = vsyncpa [#allocation4], 1

</llo_original>
